<compile_context>
chip_gen: v5e
topology: v5e:2x2
jax: 0.10.0
libtpu: 0.0.40
codegen_flags: <defaults>
</compile_context>

<pallas_src>
import functools

import jax
import jax.numpy as jnp
from jax import lax
from jax.experimental import pallas as pl
from jax.experimental.pallas import tpu as pltpu


def bert_pooler_kernel(x_ref, wt_ref, b_ref, o_ref, m_sc, den_sc, num_sc, *, chunk):
    """One (batch-tile, seq-tile) grid step of the self-weighted softmax pooler.

    x_ref : (bs, Sblk, H)  current input tile
    wt_ref: (H, H)         pre-transposed Linear weight (in, out) -- grid-invariant
    b_ref : (1, H)         Linear bias (f32)                      -- grid-invariant
    o_ref : (bs, H)        output tile (same block across the seq axis)
    m/den/num_sc : (bs, H) f32 scratch -- running max / denominator / numerator
    chunk : static sub-chunk (seq rows) processed per inner step (single pass)
    """
    s = pl.program_id(1)

    @pl.when(s == 0)
    def _():
        m_sc[...] = jnp.full_like(m_sc, -jnp.inf)
        den_sc[...] = jnp.zeros_like(den_sc)
        num_sc[...] = jnp.zeros_like(num_sc)

    sblk = x_ref.shape[1]
    n_chunks = sblk // chunk

    # Fused single pass over the tile: per-chunk online-softmax statistics.
    def body(c, carry):
        m, den, num = carry
        off = pl.multiple_of(c * chunk, chunk)
        xc = x_ref[:, pl.ds(off, chunk), :].astype(jnp.float32)    # (bs, chunk, H)
        m_new = jnp.maximum(m, jnp.max(xc, axis=1))                # (bs, H)
        scale = jnp.exp(m - m_new)                                 # rescale old partials
        e = jnp.exp(xc - m_new[:, None, :])                        # (bs, chunk, H)
        den = den * scale + jnp.sum(e, axis=1)
        num = num * scale + jnp.sum(xc * e, axis=1)
        return m_new, den, num

    m, den, num = lax.fori_loop(
        0, n_chunks, body, (m_sc[...], den_sc[...], num_sc[...]), unroll=True)
    m_sc[...] = m
    den_sc[...] = den
    num_sc[...] = num

    @pl.when(s == pl.num_programs(1) - 1)
    def _():
        # pooled[b, h] = sum_s x[b,s,h] * softmax_s(x[b,:,h])
        pooled = num * pl.reciprocal(den, approx=True)             # (bs, H), f32
        # Linear: pooled @ W^T + b, W pre-transposed (and bf16-cast) outside.
        y = jnp.dot(pooled.astype(wt_ref.dtype), wt_ref[...],
                    preferred_element_type=jnp.float32)
        o_ref[...] = jnp.tanh(y + b_ref[...]).astype(o_ref.dtype)


def _pick_block_b(B):
    """Batch tile: multiple of 8 dividing B (output sublane rule); prefer >=2
    blocks along the 'parallel' axis (v7x has 2 TCs) and 16-64 rows per block."""
    if B % 8 != 0:
        return B
    for bb in (64, 48, 32, 24, 16, 8):
        if B % bb == 0 and B // bb >= 2:
            return bb
    return 8  # B == 8: single block (can't split under the x8 rule)


def _largest_seq_tile(S, cap):
    """Largest divisor of S that is <= cap and a multiple of 8 (or S itself)."""
    if S <= cap:
        return S
    for d in range(min(cap, S), 7, -1):
        if S % d == 0 and d % 8 == 0:
            return d
    return S  # no tileable divisor: whole sequence (still correct)


def _pick_chunk(block_s):
    """Inner single-pass sub-chunk (seq rows): 8..64, dividing block_s."""
    for c in (64, 32, 16, 8):
        if block_s % c == 0:
            return c
    return block_s


def my_bert_pooler(x, weight, bias, *, block_b=None, block_s=None,
                   weight_dtype=jnp.bfloat16, vmem_limit_bytes=None):
    """x: (B, S, H) (f32 or bf16); weight: (H, H) torch-style (out, in); bias: (H,)."""
    B, S, H = x.shape

    # ---- generation-aware VMEM budget --------------------------------------
    try:
        vmem_cap = int(pltpu.get_tpu_info().vmem_capacity_bytes)
    except Exception:
        vmem_cap = 64 << 20  # conservative (v7x per-core)
    if vmem_limit_bytes is None:
        # ~3/4 of physical, capped at 96 MiB (v5e/v6e -> 96 MiB, v7x -> 48 MiB)
        vmem_limit_bytes = int(min((vmem_cap * 3) // 4, 96 << 20))

    # ---- batch tile ---------------------------------------------------------
    if block_b is None:
        block_b = _pick_block_b(B)
    if B % block_b != 0 or (block_b != B and block_b % 8 != 0):
        block_b = B  # safe fallback: no batch tiling (still correct)

    # ---- sequence tile: keep the double-buffered x working set small --------
    if block_s is None:
        x_tile_budget = (vmem_limit_bytes * 2) // 5            # ~40% of the limit
        bytes_per_row = 2 * block_b * H * x.dtype.itemsize     # double-buffered
        cap = int(max(8, x_tile_budget // bytes_per_row))
        block_s = _largest_seq_tile(S, min(cap, 512))
    if S % block_s != 0 or (block_s != S and block_s % 8 != 0):
        block_s = S  # safe fallback: whole sequence in one tile

    chunk = _pick_chunk(block_s)

    wt = jnp.asarray(weight).T.astype(weight_dtype)            # (in, out), MXU-native
    bias2d = jnp.asarray(bias).astype(jnp.float32).reshape(1, H)

    kernel = functools.partial(bert_pooler_kernel, chunk=chunk)
    grid = (B // block_b, S // block_s)

    def build(single_buffer_consts):
        const_kw = ({"pipeline_mode": pl.Buffered(1)} if single_buffer_consts else {})
        return pl.pallas_call(
            kernel,
            out_shape=jax.ShapeDtypeStruct((B, H), x.dtype),
            grid=grid,
            in_specs=[
                pl.BlockSpec((block_b, block_s, H), lambda i, s: (i, s, 0)),
                pl.BlockSpec((H, H), lambda i, s: (0, 0), **const_kw),  # weight
                pl.BlockSpec((1, H), lambda i, s: (0, 0), **const_kw),  # bias
            ],
            out_specs=pl.BlockSpec((block_b, H), lambda i, s: (i, 0)),
            scratch_shapes=[
                pltpu.VMEM((block_b, H), jnp.float32),   # running max
                pltpu.VMEM((block_b, H), jnp.float32),   # running denominator
                pltpu.VMEM((block_b, H), jnp.float32),   # running numerator
            ],
            compiler_params=pltpu.CompilerParams(
                dimension_semantics=("parallel", "arbitrary"),
                vmem_limit_bytes=vmem_limit_bytes,
            ),
        )

    try:
        return build(True)(x, wt, bias2d)
    except Exception:
        # Fallback if this JAX build rejects pl.Buffered(1) on grid-invariant inputs.
        return build(False)(x, wt, bias2d)


def _reference(x, weight, bias):
    xt = jnp.transpose(x, (0, 2, 1)).astype(jnp.float32)       # (B, H, S)
    p = jax.nn.softmax(xt, axis=2)
    pooled = jnp.sum(xt * p, axis=2)                           # (B, H)
    return jnp.tanh(pooled @ jnp.asarray(weight, jnp.float32).T
                    + jnp.asarray(bias, jnp.float32))


if __name__ == "__main__":
    # TODO(synk): training-mode torch.multinomial sampling branch not implemented
    #             (eval/inference forward only).
    B, S, H = 2, 8, 32  # batch, seq (token_cnt), hidden (token_sz)
    key = jax.random.PRNGKey(0)
    kx, kw, kb = jax.random.split(key, 3)

    x = jax.random.normal(kx, (B, S, H), dtype=jnp.float32)
    # Deterministic Linear(H, H) params (synthetic, not a checkpoint load)
    weight = jax.random.normal(kw, (H, H), dtype=jnp.float32) * (1.0 / jnp.sqrt(H))
    bias = jax.random.normal(kb, (H,), dtype=jnp.float32) * 0.01

    out = my_bert_pooler(x, weight, bias)
    out = jax.block_until_ready(out)

    ref = _reference(x, weight, bias)
    assert out.shape == (B, H)
    # bf16 weight on the MXU + approx reciprocal: compare with a loose tolerance.
    assert jnp.allclose(out, ref, atol=2e-2, rtol=2e-2), "mismatch vs JAX reference"

    print("KERNEL_OK")
</pallas_src>

<mosaic_0001>
module attributes {stable_mosaic.version = 11 : i64} {
  func.func @bert_pooler_kernel(%arg0: i32, %arg1: i32, %arg2: memref<2x8x32xf32, #tpu.memory_space<vmem>>, %arg3: memref<32x32xbf16, #tpu.memory_space<vmem>>, %arg4: memref<1x32xf32, #tpu.memory_space<vmem>>, %arg5: memref<2x32xf32, #tpu.memory_space<vmem>>, %arg6: memref<2x32xf32, #tpu.memory_space<vmem>>, %arg7: memref<2x32xf32, #tpu.memory_space<vmem>>, %arg8: memref<2x32xf32, #tpu.memory_space<vmem>>) attributes {dimension_semantics = [#tpu.dimension_semantics<parallel>, #tpu.dimension_semantics<arbitrary>], iteration_bounds = array<i64: 1, 1>, scalar_prefetch = 0 : i64, scratch_operands = 3 : i64, tpu.core_type = #tpu.core_type<tc>, window_params = [{transform_indices = @transform_0, window_bounds = array<i64: 2, 8, 32>}, {pipeline_mode = #tpu.pipeline_mode<synchronous>, transform_indices = @transform_1, window_bounds = array<i64: 32, 32>}, {pipeline_mode = #tpu.pipeline_mode<synchronous>, transform_indices = @transform_2, window_bounds = array<i64: 1, 32>}, {transform_indices = @transform_3, window_bounds = array<i64: 2, 32>}]} {
    %c0_i32 = arith.constant 0 : i32
    %0 = arith.cmpi eq, %arg1, %c0_i32 : i32
    %1 = arith.extui %0 : i1 to i32
    %c0_i32_0 = arith.constant 0 : i32
    %2 = arith.cmpi ne, %1, %c0_i32_0 : i32
    scf.if %2 {
      %cst_19 = arith.constant 0xFF800000 : f32
      %31 = vector.broadcast %cst_19 : f32 to vector<2x32xf32>
      %c0_20 = arith.constant 0 : index
      %c0_21 = arith.constant 0 : index
      %32 = vector.load %arg6[%c0_20, %c0_21] : memref<2x32xf32, #tpu.memory_space<vmem>>, vector<2x32xf32>
      tpu.vector_store %arg6[%c0_20, %c0_21], %31 {strides = array<i32>} : memref<2x32xf32, #tpu.memory_space<vmem>>, vector<2x32xf32>,
      %cst_22 = arith.constant 0.000000e+00 : f32
      %33 = vector.broadcast %cst_22 : f32 to vector<2x32xf32>
      %c0_23 = arith.constant 0 : index
      %c0_24 = arith.constant 0 : index
      %34 = vector.load %arg7[%c0_23, %c0_24] : memref<2x32xf32, #tpu.memory_space<vmem>>, vector<2x32xf32>
      tpu.vector_store %arg7[%c0_23, %c0_24], %33 {strides = array<i32>} : memref<2x32xf32, #tpu.memory_space<vmem>>, vector<2x32xf32>,
      %cst_25 = arith.constant 0.000000e+00 : f32
      %35 = vector.broadcast %cst_25 : f32 to vector<2x32xf32>
      %c0_26 = arith.constant 0 : index
      %c0_27 = arith.constant 0 : index
      %36 = vector.load %arg8[%c0_26, %c0_27] : memref<2x32xf32, #tpu.memory_space<vmem>>, vector<2x32xf32>
      tpu.vector_store %arg8[%c0_26, %c0_27], %35 {strides = array<i32>} : memref<2x32xf32, #tpu.memory_space<vmem>>, vector<2x32xf32>,
    } else {
    }
    %c0 = arith.constant 0 : index
    %c0_1 = arith.constant 0 : index
    %3 = vector.load %arg6[%c0, %c0_1] : memref<2x32xf32, #tpu.memory_space<vmem>>, vector<2x32xf32>
    %c0_2 = arith.constant 0 : index
    %c0_3 = arith.constant 0 : index
    %4 = vector.load %arg7[%c0_2, %c0_3] : memref<2x32xf32, #tpu.memory_space<vmem>>, vector<2x32xf32>
    %c0_4 = arith.constant 0 : index
    %c0_5 = arith.constant 0 : index
    %5 = vector.load %arg8[%c0_4, %c0_5] : memref<2x32xf32, #tpu.memory_space<vmem>>, vector<2x32xf32>
    %c0_i32_6 = arith.constant 0 : i32
    %c8_i32 = arith.constant 8 : i32
    %6 = arith.muli %c0_i32_6, %c8_i32 : i32
    %7 = tpu.assume_multiple %6, 8 : i32
    %c0_7 = arith.constant 0 : index
    %8 = arith.index_cast %7 : i32 to index
    %c0_8 = arith.constant 0 : index
    %9 = vector.load %arg2[%c0_7, %8, %c0_8] : memref<2x8x32xf32, #tpu.memory_space<vmem>>, vector<2x8x32xf32>
    %cst = arith.constant dense<0xFF800000> : vector<2x32xf32>
    %10 = vector.multi_reduction <maximumf>, %9, %cst [1] : vector<2x8x32xf32> to vector<2x32xf32>
    %11 = arith.maximumf %3, %10 : vector<2x32xf32>
    %12 = arith.subf %3, %11 : vector<2x32xf32>
    %13 = math.exp %12 : vector<2x32xf32>
    %14 = vector.shape_cast %11 : vector<2x32xf32> to vector<2x1x32xf32>
    %15 = vector.broadcast %14 : vector<2x1x32xf32> to vector<2x8x32xf32>
    %16 = arith.subf %9, %15 : vector<2x8x32xf32>
    %17 = math.exp %16 : vector<2x8x32xf32>
    %18 = arith.mulf %4, %13 : vector<2x32xf32>
    %cst_9 = arith.constant dense<0.000000e+00> : vector<2x32xf32>
    %19 = vector.multi_reduction <add>, %17, %cst_9 [1] : vector<2x8x32xf32> to vector<2x32xf32>
    %20 = arith.addf %18, %19 : vector<2x32xf32>
    %21 = arith.mulf %5, %13 : vector<2x32xf32>
    %22 = arith.mulf %9, %17 : vector<2x8x32xf32>
    %cst_10 = arith.constant dense<0.000000e+00> : vector<2x32xf32>
    %23 = vector.multi_reduction <add>, %22, %cst_10 [1] : vector<2x8x32xf32> to vector<2x32xf32>
    %24 = arith.addf %21, %23 : vector<2x32xf32>
    %c1_i32 = arith.constant 1 : i32
    %c0_11 = arith.constant 0 : index
    %c0_12 = arith.constant 0 : index
    %25 = vector.load %arg6[%c0_11, %c0_12] : memref<2x32xf32, #tpu.memory_space<vmem>>, vector<2x32xf32>
    tpu.vector_store %arg6[%c0_11, %c0_12], %11 {strides = array<i32>} : memref<2x32xf32, #tpu.memory_space<vmem>>, vector<2x32xf32>,
    %c0_13 = arith.constant 0 : index
    %c0_14 = arith.constant 0 : index
    %26 = vector.load %arg7[%c0_13, %c0_14] : memref<2x32xf32, #tpu.memory_space<vmem>>, vector<2x32xf32>
    tpu.vector_store %arg7[%c0_13, %c0_14], %20 {strides = array<i32>} : memref<2x32xf32, #tpu.memory_space<vmem>>, vector<2x32xf32>,
    %c0_15 = arith.constant 0 : index
    %c0_16 = arith.constant 0 : index
    %27 = vector.load %arg8[%c0_15, %c0_16] : memref<2x32xf32, #tpu.memory_space<vmem>>, vector<2x32xf32>
    tpu.vector_store %arg8[%c0_15, %c0_16], %24 {strides = array<i32>} : memref<2x32xf32, #tpu.memory_space<vmem>>, vector<2x32xf32>,
    %c0_i32_17 = arith.constant 0 : i32
    %28 = arith.cmpi eq, %arg1, %c0_i32_17 : i32
    %29 = arith.extui %28 : i1 to i32
    %c0_i32_18 = arith.constant 0 : i32
    %30 = arith.cmpi ne, %29, %c0_i32_18 : i32
    scf.if %30 {
      %31 = tpu.reciprocal %20 {approx = true} : vector<2x32xf32> -> vector<2x32xf32>
      %32 = arith.mulf %24, %31 : vector<2x32xf32>
      %33 = arith.truncf %32 : vector<2x32xf32> to vector<2x32xbf16>
      %c0_19 = arith.constant 0 : index
      %c0_20 = arith.constant 0 : index
      %34 = vector.load %arg3[%c0_19, %c0_20] : memref<32x32xbf16, #tpu.memory_space<vmem>>, vector<32x32xbf16>
      %cst_21 = arith.constant dense<0.000000e+00> : vector<2x32xf32>
      %35 = tpu.matmul %33, %34, %cst_21 {dimension_numbers = #tpu.dot_dimension_numbers<[1], [0], [0], [1], [0, 0, 1, 1], [], []>} : vector<2x32xbf16>, vector<32x32xbf16>, vector<2x32xf32> -> vector<2x32xf32>
      %c0_22 = arith.constant 0 : index
      %c0_23 = arith.constant 0 : index
      %36 = vector.load %arg4[%c0_22, %c0_23] : memref<1x32xf32, #tpu.memory_space<vmem>>, vector<1x32xf32>
      %37 = vector.broadcast %36 : vector<1x32xf32> to vector<2x32xf32>
      %38 = arith.addf %35, %37 : vector<2x32xf32>
      %39 = math.tanh %38 : vector<2x32xf32>
      %c0_24 = arith.constant 0 : index
      %c0_25 = arith.constant 0 : index
      %40 = vector.load %arg5[%c0_24, %c0_25] : memref<2x32xf32, #tpu.memory_space<vmem>>, vector<2x32xf32>
      tpu.vector_store %arg5[%c0_24, %c0_25], %39 {strides = array<i32>} : memref<2x32xf32, #tpu.memory_space<vmem>>, vector<2x32xf32>,
    } else {
    }
    return
  }
  func.func @transform_0(%arg0: i32, %arg1: i32) -> (i32, i32, i32) {
    %c0_i32 = arith.constant 0 : i32
    %c0_i32_0 = arith.constant 0 : i32
    return %arg0, %arg1, %c0_i32 : i32, i32, i32
  }
  func.func @transform_1(%arg0: i32, %arg1: i32) -> (i32, i32) {
    %c0_i32 = arith.constant 0 : i32
    %c0_i32_0 = arith.constant 0 : i32
    %c0_i32_1 = arith.constant 0 : i32
    return %c0_i32, %c0_i32_0 : i32, i32
  }
  func.func @transform_2(%arg0: i32, %arg1: i32) -> (i32, i32) {
    %c0_i32 = arith.constant 0 : i32
    %c0_i32_0 = arith.constant 0 : i32
    %c0_i32_1 = arith.constant 0 : i32
    return %c0_i32, %c0_i32_0 : i32, i32
  }
  func.func @transform_3(%arg0: i32, %arg1: i32) -> (i32, i32) {
    %c0_i32 = arith.constant 0 : i32
    %c0_i32_0 = arith.constant 0 : i32
    return %arg0, %c0_i32 : i32, i32
  }
}

module attributes {stable_mosaic.version = 11 : i64} {
  func.func @bert_pooler_kernel(%arg0: i32, %arg1: i32, %arg2: memref<2x8x32xf32, #tpu.memory_space<vmem>>, %arg3: memref<32x32xbf16, #tpu.memory_space<vmem>>, %arg4: memref<1x32xf32, #tpu.memory_space<vmem>>, %arg5: memref<2x32xf32, #tpu.memory_space<vmem>>, %arg6: memref<2x32xf32, #tpu.memory_space<vmem>>, %arg7: memref<2x32xf32, #tpu.memory_space<vmem>>, %arg8: memref<2x32xf32, #tpu.memory_space<vmem>>) attributes {dimension_semantics = [#tpu.dimension_semantics<parallel>, #tpu.dimension_semantics<arbitrary>], iteration_bounds = array<i64: 1, 1>, scalar_prefetch = 0 : i64, scratch_operands = 3 : i64, tpu.core_type = #tpu.core_type<tc>, window_params = [{transform_indices = @transform_0, window_bounds = array<i64: 2, 8, 32>}, {pipeline_mode = #tpu.pipeline_mode<synchronous>, transform_indices = @transform_1, window_bounds = array<i64: 32, 32>}, {pipeline_mode = #tpu.pipeline_mode<synchronous>, transform_indices = @transform_2, window_bounds = array<i64: 1, 32>}, {transform_indices = @transform_3, window_bounds = array<i64: 2, 32>}]} {
    %c0_i32 = arith.constant 0 : i32
    %0 = arith.cmpi eq, %arg1, %c0_i32 : i32
    %1 = arith.extui %0 : i1 to i32
    %c0_i32_0 = arith.constant 0 : i32
    %2 = arith.cmpi ne, %1, %c0_i32_0 : i32
    scf.if %2 {
      %cst_19 = arith.constant 0xFF800000 : f32
      %31 = vector.broadcast %cst_19 : f32 to vector<2x32xf32>
      %c0_20 = arith.constant 0 : index
      %c0_21 = arith.constant 0 : index
      %32 = vector.load %arg6[%c0_20, %c0_21] : memref<2x32xf32, #tpu.memory_space<vmem>>, vector<2x32xf32>
      tpu.vector_store %arg6[%c0_20, %c0_21], %31 {strides = array<i32>} : memref<2x32xf32, #tpu.memory_space<vmem>>, vector<2x32xf32>,
      %cst_22 = arith.constant 0.000000e+00 : f32
      %33 = vector.broadcast %cst_22 : f32 to vector<2x32xf32>
      %c0_23 = arith.constant 0 : index
      %c0_24 = arith.constant 0 : index
      %34 = vector.load %arg7[%c0_23, %c0_24] : memref<2x32xf32, #tpu.memory_space<vmem>>, vector<2x32xf32>
      tpu.vector_store %arg7[%c0_23, %c0_24], %33 {strides = array<i32>} : memref<2x32xf32, #tpu.memory_space<vmem>>, vector<2x32xf32>,
      %cst_25 = arith.constant 0.000000e+00 : f32
      %35 = vector.broadcast %cst_25 : f32 to vector<2x32xf32>
      %c0_26 = arith.constant 0 : index
      %c0_27 = arith.constant 0 : index
      %36 = vector.load %arg8[%c0_26, %c0_27] : memref<2x32xf32, #tpu.memory_space<vmem>>, vector<2x32xf32>
      tpu.vector_store %arg8[%c0_26, %c0_27], %35 {strides = array<i32>} : memref<2x32xf32, #tpu.memory_space<vmem>>, vector<2x32xf32>,
    } else {
    }
    %c0 = arith.constant 0 : index
    %c0_1 = arith.constant 0 : index
    %3 = vector.load %arg6[%c0, %c0_1] : memref<2x32xf32, #tpu.memory_space<vmem>>, vector<2x32xf32>
    %c0_2 = arith.constant 0 : index
    %c0_3 = arith.constant 0 : index
    %4 = vector.load %arg7[%c0_2, %c0_3] : memref<2x32xf32, #tpu.memory_space<vmem>>, vector<2x32xf32>
    %c0_4 = arith.constant 0 : index
    %c0_5 = arith.constant 0 : index
    %5 = vector.load %arg8[%c0_4, %c0_5] : memref<2x32xf32, #tpu.memory_space<vmem>>, vector<2x32xf32>
    %c0_i32_6 = arith.constant 0 : i32
    %c8_i32 = arith.constant 8 : i32
    %6 = arith.muli %c0_i32_6, %c8_i32 : i32
    %7 = tpu.assume_multiple %6, 8 : i32
    %c0_7 = arith.constant 0 : index
    %8 = arith.index_cast %7 : i32 to index
    %c0_8 = arith.constant 0 : index
    %9 = vector.load %arg2[%c0_7, %8, %c0_8] : memref<2x8x32xf32, #tpu.memory_space<vmem>>, vector<2x8x32xf32>
    %cst = arith.constant dense<0xFF800000> : vector<2x32xf32>
    %10 = vector.multi_reduction <maximumf>, %9, %cst [1] : vector<2x8x32xf32> to vector<2x32xf32>
    %11 = arith.maximumf %3, %10 : vector<2x32xf32>
    %12 = arith.subf %3, %11 : vector<2x32xf32>
    %13 = math.exp %12 : vector<2x32xf32>
    %14 = vector.shape_cast %11 : vector<2x32xf32> to vector<2x1x32xf32>
    %15 = vector.broadcast %14 : vector<2x1x32xf32> to vector<2x8x32xf32>
    %16 = arith.subf %9, %15 : vector<2x8x32xf32>
    %17 = math.exp %16 : vector<2x8x32xf32>
    %18 = arith.mulf %4, %13 : vector<2x32xf32>
    %cst_9 = arith.constant dense<0.000000e+00> : vector<2x32xf32>
    %19 = vector.multi_reduction <add>, %17, %cst_9 [1] : vector<2x8x32xf32> to vector<2x32xf32>
    %20 = arith.addf %18, %19 : vector<2x32xf32>
    %21 = arith.mulf %5, %13 : vector<2x32xf32>
    %22 = arith.mulf %9, %17 : vector<2x8x32xf32>
    %cst_10 = arith.constant dense<0.000000e+00> : vector<2x32xf32>
    %23 = vector.multi_reduction <add>, %22, %cst_10 [1] : vector<2x8x32xf32> to vector<2x32xf32>
    %24 = arith.addf %21, %23 : vector<2x32xf32>
    %c1_i32 = arith.constant 1 : i32
    %c0_11 = arith.constant 0 : index
    %c0_12 = arith.constant 0 : index
    %25 = vector.load %arg6[%c0_11, %c0_12] : memref<2x32xf32, #tpu.memory_space<vmem>>, vector<2x32xf32>
    tpu.vector_store %arg6[%c0_11, %c0_12], %11 {strides = array<i32>} : memref<2x32xf32, #tpu.memory_space<vmem>>, vector<2x32xf32>,
    %c0_13 = arith.constant 0 : index
    %c0_14 = arith.constant 0 : index
    %26 = vector.load %arg7[%c0_13, %c0_14] : memref<2x32xf32, #tpu.memory_space<vmem>>, vector<2x32xf32>
    tpu.vector_store %arg7[%c0_13, %c0_14], %20 {strides = array<i32>} : memref<2x32xf32, #tpu.memory_space<vmem>>, vector<2x32xf32>,
    %c0_15 = arith.constant 0 : index
    %c0_16 = arith.constant 0 : index
    %27 = vector.load %arg8[%c0_15, %c0_16] : memref<2x32xf32, #tpu.memory_space<vmem>>, vector<2x32xf32>
    tpu.vector_store %arg8[%c0_15, %c0_16], %24 {strides = array<i32>} : memref<2x32xf32, #tpu.memory_space<vmem>>, vector<2x32xf32>,
    %c0_i32_17 = arith.constant 0 : i32
    %28 = arith.cmpi eq, %arg1, %c0_i32_17 : i32
    %29 = arith.extui %28 : i1 to i32
    %c0_i32_18 = arith.constant 0 : i32
    %30 = arith.cmpi ne, %29, %c0_i32_18 : i32
    scf.if %30 {
      %31 = tpu.reciprocal %20 {approx = true} : vector<2x32xf32> -> vector<2x32xf32>
      %32 = arith.mulf %24, %31 : vector<2x32xf32>
      %33 = arith.truncf %32 : vector<2x32xf32> to vector<2x32xbf16>
      %c0_19 = arith.constant 0 : index
      %c0_20 = arith.constant 0 : index
      %34 = vector.load %arg3[%c0_19, %c0_20] : memref<32x32xbf16, #tpu.memory_space<vmem>>, vector<32x32xbf16>
      %cst_21 = arith.constant dense<0.000000e+00> : vector<2x32xf32>
      %35 = tpu.matmul %33, %34, %cst_21 {dimension_numbers = #tpu.dot_dimension_numbers<[1], [0], [0], [1], [0, 0, 1, 1], [], []>} : vector<2x32xbf16>, vector<32x32xbf16>, vector<2x32xf32> -> vector<2x32xf32>
      %c0_22 = arith.constant 0 : index
      %c0_23 = arith.constant 0 : index
      %36 = vector.load %arg4[%c0_22, %c0_23] : memref<1x32xf32, #tpu.memory_space<vmem>>, vector<1x32xf32>
      %37 = vector.broadcast %36 : vector<1x32xf32> to vector<2x32xf32>
      %38 = arith.addf %35, %37 : vector<2x32xf32>
      %39 = math.tanh %38 : vector<2x32xf32>
      %c0_24 = arith.constant 0 : index
      %c0_25 = arith.constant 0 : index
      %40 = vector.load %arg5[%c0_24, %c0_25] : memref<2x32xf32, #tpu.memory_space<vmem>>, vector<2x32xf32>
      tpu.vector_store %arg5[%c0_24, %c0_25], %39 {strides = array<i32>} : memref<2x32xf32, #tpu.memory_space<vmem>>, vector<2x32xf32>,
    } else {
    }
    return
  }
  func.func @transform_0(%arg0: i32, %arg1: i32) -> (i32, i32, i32) {
    %c0_i32 = arith.constant 0 : i32
    %c0_i32_0 = arith.constant 0 : i32
    return %arg0, %arg1, %c0_i32 : i32, i32, i32
  }
  func.func @transform_1(%arg0: i32, %arg1: i32) -> (i32, i32) {
    %c0_i32 = arith.constant 0 : i32
    %c0_i32_0 = arith.constant 0 : i32
    %c0_i32_1 = arith.constant 0 : i32
    return %c0_i32, %c0_i32_0 : i32, i32
  }
  func.func @transform_2(%arg0: i32, %arg1: i32) -> (i32, i32) {
    %c0_i32 = arith.constant 0 : i32
    %c0_i32_0 = arith.constant 0 : i32
    %c0_i32_1 = arith.constant 0 : i32
    return %c0_i32, %c0_i32_0 : i32, i32
  }
  func.func @transform_3(%arg0: i32, %arg1: i32) -> (i32, i32) {
    %c0_i32 = arith.constant 0 : i32
    %c0_i32_0 = arith.constant 0 : i32
    return %arg0, %c0_i32 : i32, i32
  }
}

</mosaic_0001>

<llo_original>
// kernel: tpu_custom_call.1
$region0: #{tpu_custom_call.1}
  #allocation0 [shape = 'u32[]', space=smem, size = 0x4, offset = 0x4, fixed_abs, tag = 'smem constant byte address 0x4 - core index']
  #allocation1 [shape = 'u32[72,128]{1,0:T(1,128)}', space=vmem, size = 0x9000, scoped, tag = 'internal scratch']
  #allocation2 [shape = 'f32[2,32]{1,0:T(2,128)}', space=vmem, size = 0x400, scoped, tag = 'scratch operand']
  #allocation3 [shape = 'f32[2,32]{1,0:T(2,128)}', space=vmem, size = 0x400, scoped, tag = 'scratch operand']
  #allocation4 [shape = 'f32[2,32]{1,0:T(2,128)}', space=vmem, size = 0x400, scoped, tag = 'scratch operand']
  %s0 = inlined_call_operand.hbm [shape: f32[2,8,32], index: 0, kind: input, shape index: {}]
  %s1 = inlined_call_operand.hbm [shape: bf16[32,32], index: 1, kind: input, shape index: {}]
  %s2 = inlined_call_operand.vmem [shape: f32[1,32], index: 2, kind: input, shape index: {}]
  %s3 = inlined_call_operand.hbm [shape: f32[2,32], index: 3, kind: output, shape index: {}]
  %s4 = sld [smem:[#allocation0]]
  $region38: #{tpu_custom_call.1} parent=0
    _
  %s6 = ssub.s32 1, %s4
  %s7 = scalar_select 0, %s6, %s4
  $region1: #{tpu_custom_call.1} parent=0
    #allocation5 [shape = 'u8[8192]{0}', space=vmem, size = 0x2000, scoped, tag = 'input window, operand 0, single buffered']
    #allocation6 [shape = 's32[1]{0}', space=sflag, size = 0x4, scoped, tag = 'scoped memory for tpu_custom_call.1']
    #allocation7 [shape = 's32[1]{0}', space=sflag, size = 0x4, scoped, tag = 'scoped memory for tpu_custom_call.1']
    #allocation8 [shape = 'u8[8192]{0}', space=vmem, size = 0x2000, scoped, tag = 'input window, operand 1, single buffered']
    #allocation9 [shape = 's32[1]{0}', space=sflag, size = 0x4, scoped, tag = 'scoped memory for tpu_custom_call.1']
    #allocation10 [shape = 'u8[1024]{0}', space=vmem, size = 0x400, scoped, tag = 'output window, operand 0, single buffered']
    %8 = vsyncpa [#allocation6], 0
    %9 = vsyncpa [#allocation9], 0
    %10 = vsyncpa [#allocation7], 0
    // Predicated region
    $region2: #{tpu_custom_call.1} parent=1 // pred_check
      _
    $region3: #{tpu_custom_call.1} parent=1 // pred_check_branch
      %12 = sbr.rel (0) target = $region5
    $region4: #{tpu_custom_call.1} parent=1 // pred_region
      %14 = vsyncadd [#allocation6], 0
      %s15 = sshll.u32 %s0, 4
      %s16 = int_to_ptr.hbm [resolvable:$true] %s15
      %s17 = sshll.u32 [#allocation5], 4
      %s18 = int_to_ptr.vmem [resolvable:$true] %s17
      %23 = dma.hbm_to_vmem [thread:$0]  %s16, 256, %s18, [#allocation6], 128, 128, 8
    $region5: #{tpu_custom_call.1} parent=1 // pred_fallthru
      _
    // Predicated region
    $region6: #{tpu_custom_call.1} parent=1 // pred_check
      _
    $region7: #{tpu_custom_call.1} parent=1 // pred_check_branch
      %25 = sbr.rel (0) target = $region9
    $region8: #{tpu_custom_call.1} parent=1 // pred_region
      %27 = vsyncadd [#allocation9], 0
      %s28 = sshll.u32 %s1, 4
      %s29 = int_to_ptr.hbm [resolvable:$true] %s28
      %s30 = sshll.u32 [#allocation8], 4
      %s31 = int_to_ptr.vmem [resolvable:$true] %s30
      %36 = dma.hbm_to_vmem [thread:$0]  %s29, 256, %s31, [#allocation9], 64, 64, 4
    $region9: #{tpu_custom_call.1} parent=1 // pred_fallthru
      _
    // Predicated region
    $region10: #{tpu_custom_call.1} parent=1 // pred_check
      _
    $region11: #{tpu_custom_call.1} parent=1 // pred_check_branch
      %38 = sbr.rel (0) target = $region13
    $region12: #{tpu_custom_call.1} parent=1 // pred_region
      _
    $region13: #{tpu_custom_call.1} parent=1 // pred_fallthru
      _
    // Predicated region
    $region14: #{tpu_custom_call.1} parent=1 // pred_check
      _
    $region15: #{tpu_custom_call.1} parent=1 // pred_check_branch
      %40 = sbr.rel (0) target = $region17
    $region16: #{tpu_custom_call.1} parent=1 // pred_region
      %42 = dma.done [#allocation6], 256
    $region17: #{tpu_custom_call.1} parent=1 // pred_fallthru
      _
    // Predicated region
    $region18: #{tpu_custom_call.1} parent=1 // pred_check
      _
    $region19: #{tpu_custom_call.1} parent=1 // pred_check_branch
      %44 = sbr.rel (0) target = $region21
    $region20: #{tpu_custom_call.1} parent=1 // pred_region
      %46 = dma.done [#allocation9], 256
    $region21: #{tpu_custom_call.1} parent=1 // pred_fallthru
      _
    %p48 = scmp.eq.s32.totalorder 0, 0
    // Predicated region
    $region22: #{tpu_custom_call.1} parent=1 // pred_check
      %p49 = pneg %p48
    $region23: #{tpu_custom_call.1} parent=1 // pred_check_branch
      %51 = sbr.rel (%p49) target = $region25
    $region24: #{tpu_custom_call.1} parent=1 // pred_region
      %vm52 = vcmask 254976
      %53 = vst.msk [vmem:[#allocation2] sm:$0x3] %vm52, -inf
      %54 = vst.msk [vmem:[#allocation3] sm:$0x3] %vm52, 0.0
      %55 = vst.msk [vmem:[#allocation4] sm:$0x3] %vm52, 0.0
    $region25: #{tpu_custom_call.1} parent=1 // pred_fallthru
      _
    %v56 = vld [vmem:[#allocation2] sm:$0x3]
    %v57 = vld [vmem:[#allocation3] sm:$0x3]
    %v58 = vld [vmem:[#allocation4] sm:$0x3]
    %v59 = vld [vmem:[#allocation5] sm:$0xff]
    %v60 = vld [vmem:[#allocation5 + $0x8] sm:$0xff]
    %vm61 = vcmask 261120
    %v62 = vsel %vm61, %v59, -inf
    %v63 = vrot.slane %v62, 4
    %v64 = vmax.f32 %v62, %v63
    %v65 = vrot.slane %v64, 2
    %v66 = vmax.f32 %v64, %v65
    %v67 = vrot.slane %v66, 1
    %v68 = vmax.f32 %v66, %v67
    %v69 = vsel %vm61, %v60, -inf
    %v70 = vrot.slane %v69, 4
    %v71 = vmax.f32 %v69, %v70
    %v72 = vrot.slane %v71, 2
    %v73 = vmax.f32 %v71, %v72
    %v74 = vrot.slane %v73, 1
    %v75 = vmax.f32 %v73, %v74
    %vm78 = vcmask 1041409
    %v79 = vsel %vm78, %v75, %v68
    %v81 = vmax.f32 %v56, %v79
    %v82 = vsub.f32 %v56, %v81
    %v83 = vmul.f32 %v82, 1.442695
    %v84 = vpow.pop %v83
    %v86 = vrot.slane %v81, 1
    %v87 = vperm.slane %v81, 0
    %v88 = vperm.slane %v86, 0
    %v91 = vsub.f32 %v59, %v87
    %v92 = vsub.f32 %v60, %v88
    %v93 = vmul.f32 %v91, 1.442695
    %v94 = vpow.pop %v93
    %v95 = vmul.f32 %v92, 1.442695
    %v96 = vpow.pop %v95
    %v97 = vmul.f32 %v57, %v84
    %v98 = vsel %vm61, %v94, 0.0
    %v99 = vrot.slane %v98, 4
    %v100 = vadd.f32 %v98, %v99
    %v101 = vrot.slane %v100, 2
    %v102 = vadd.f32 %v100, %v101
    %v103 = vrot.slane %v102, 1
    %v104 = vadd.f32 %v102, %v103
    %v105 = vsel %vm61, %v96, 0.0
    %v106 = vrot.slane %v105, 4
    %v107 = vadd.f32 %v105, %v106
    %v108 = vrot.slane %v107, 2
    %v109 = vadd.f32 %v107, %v108
    %v110 = vrot.slane %v109, 1
    %v111 = vadd.f32 %v109, %v110
    %v114 = vsel %vm78, %v111, %v104
    %v116 = vadd.f32 %v97, %v114
    %v117 = vmul.f32 %v58, %v84
    %v118 = vmul.f32 %v59, %v94
    %v119 = vmul.f32 %v60, %v96
    %v120 = vsel %vm61, %v118, 0.0
    %v121 = vrot.slane %v120, 4
    %v122 = vadd.f32 %v120, %v121
    %v123 = vrot.slane %v122, 2
    %v124 = vadd.f32 %v122, %v123
    %v125 = vrot.slane %v124, 1
    %v126 = vadd.f32 %v124, %v125
    %v127 = vsel %vm61, %v119, 0.0
    %v128 = vrot.slane %v127, 4
    %v129 = vadd.f32 %v127, %v128
    %v130 = vrot.slane %v129, 2
    %v131 = vadd.f32 %v129, %v130
    %v132 = vrot.slane %v131, 1
    %v133 = vadd.f32 %v131, %v132
    %v136 = vsel %vm78, %v133, %v126
    %v138 = vadd.f32 %v117, %v136
    %vm139 = vcmask 254976
    %140 = vst.msk [vmem:[#allocation2] sm:$0x3] %vm139, %v81
    %141 = vst.msk [vmem:[#allocation3] sm:$0x3] %vm139, %v116
    %142 = vst.msk [vmem:[#allocation4] sm:$0x3] %vm139, %v138
    // Predicated region
    $region26: #{tpu_custom_call.1} parent=1 // pred_check
      %p143 = pneg %p48
    $region27: #{tpu_custom_call.1} parent=1 // pred_check_branch
      %145 = sbr.rel (%p143) target = $region29
    $region28: #{tpu_custom_call.1} parent=1 // pred_region
      %v146 = vrcp.pop %v116
      %v147 = vmul.f32 %v138, %v146
      %v148 = vpack.c.bf16 %v147, %v147
      %v149 = vld [vmem:[#allocation8] sm:$0xf]
      %v150 = vld [vmem:[#allocation8 + $0x4] sm:$0xf]
      %v151 = vld [vmem:[#allocation8 + $0x8] sm:$0xf]
      %v152 = vld [vmem:[#allocation8 + $0xc] sm:$0xf]
      %v153 = vld [vmem:[%s2] sm:$0x1]
      %v155 = vperm.slane %v153, 0
      %v161 = vunpack.c.l.b16 %v149
      %v162 = vunpack.c.l.b16 %v150
      %v163 = vunpack.c.l.b16 %v151
      %v164 = vunpack.c.l.b16 %v152
      %v165 = vpack.c.b16 %v162, %v161
      %v166 = vpack.c.b16 %v164, %v163
      %v170 = vsel %vm61, %v148, 0
      %172 = vmatpush.bf16.msra.mxu0 0
      %173 = vmatpush.bf16.msra.mxu0 0
      %174 = vmatpush.bf16.msra.mxu0 0
      %175 = vmatpush.bf16.msra.mxu0 0
      %176 = vmatpush.bf16.msra.mxu0 0
      %177 = vmatpush.bf16.msra.mxu0 0
      %178 = vmatpush.bf16.msra.mxu0 %v166
      %179 = vmatpush.bf16.msra.mxu0 %v165
      %180 = vmatmul.bf16.gmra.mxu0 %v170
      %v181 = vpop.f32.mrf.mxu0
      %v182 = vadd.f32 %v155, %v181
      %v183 = vpop.f32.mrf.mxu0
      %184 = vdwg.mxu0
      %v185 = vtanh.pop %v182
      %186 = vst.msk [vmem:[#allocation10] sm:$0x3] %vm139, %v185
    $region29: #{tpu_custom_call.1} parent=1 // pred_fallthru
      _
    // Predicated region
    $region30: #{tpu_custom_call.1} parent=1 // pred_check
      _
    $region31: #{tpu_custom_call.1} parent=1 // pred_check_branch
      %188 = sbr.rel (0) target = $region33
    $region32: #{tpu_custom_call.1} parent=1 // pred_region
      %190 = vsyncadd [#allocation7], 0
      %s192 = sshll.u32 [#allocation10], 4
      %s193 = int_to_ptr.vmem [resolvable:$true] %s192
      %s194 = sshll.u32 %s3, 4
      %s195 = int_to_ptr.hbm [resolvable:$true] %s194
      %197 = dma.vmem_to_hbm [thread:$0]  %s193, 32, %s195, [#allocation7]
    $region33: #{tpu_custom_call.1} parent=1 // pred_fallthru
      _
    // Predicated region
    $region34: #{tpu_custom_call.1} parent=1 // pred_check
      _
    $region35: #{tpu_custom_call.1} parent=1 // pred_check_branch
      %199 = sbr.rel (0) target = $region37
    $region36: #{tpu_custom_call.1} parent=1 // pred_region
      %201 = dma.done [#allocation7], 32
    $region37: #{tpu_custom_call.1} parent=1 // pred_fallthru
      _
    %202 = vsyncpa [#allocation6], 1
    %203 = vsyncpa [#allocation9], 1
    %204 = vsyncpa [#allocation7], 1

// kernel: tpu_custom_call.1
$region0: #{tpu_custom_call.1}
  #allocation0 [shape = 'u32[]', space=smem, size = 0x4, offset = 0x4, fixed_abs, tag = 'smem constant byte address 0x4 - core index']
  #allocation1 [shape = 'u32[72,128]{1,0:T(1,128)}', space=vmem, size = 0x9000, scoped, tag = 'internal scratch']
  #allocation2 [shape = 'f32[2,32]{1,0:T(2,128)}', space=vmem, size = 0x400, scoped, tag = 'scratch operand']
  #allocation3 [shape = 'f32[2,32]{1,0:T(2,128)}', space=vmem, size = 0x400, scoped, tag = 'scratch operand']
  #allocation4 [shape = 'f32[2,32]{1,0:T(2,128)}', space=vmem, size = 0x400, scoped, tag = 'scratch operand']
  %s0 = inlined_call_operand.hbm [shape: f32[2,8,32], index: 0, kind: input, shape index: {}]
  %s1 = inlined_call_operand.hbm [shape: bf16[32,32], index: 1, kind: input, shape index: {}]
  %s2 = inlined_call_operand.vmem [shape: f32[1,32], index: 2, kind: input, shape index: {}]
  %s3 = inlined_call_operand.hbm [shape: f32[2,32], index: 3, kind: output, shape index: {}]
  %s4 = sld [smem:[#allocation0]]
  $region38: #{tpu_custom_call.1} parent=0
    _
  %s6 = ssub.s32 1, %s4
  %s7 = scalar_select 0, %s6, %s4
  $region1: #{tpu_custom_call.1} parent=0
    #allocation5 [shape = 'u8[8192]{0}', space=vmem, size = 0x2000, scoped, tag = 'input window, operand 0, single buffered']
    #allocation6 [shape = 's32[1]{0}', space=sflag, size = 0x4, scoped, tag = 'scoped memory for tpu_custom_call.1']
    #allocation7 [shape = 's32[1]{0}', space=sflag, size = 0x4, scoped, tag = 'scoped memory for tpu_custom_call.1']
    #allocation8 [shape = 'u8[8192]{0}', space=vmem, size = 0x2000, scoped, tag = 'input window, operand 1, single buffered']
    #allocation9 [shape = 's32[1]{0}', space=sflag, size = 0x4, scoped, tag = 'scoped memory for tpu_custom_call.1']
    #allocation10 [shape = 'u8[1024]{0}', space=vmem, size = 0x400, scoped, tag = 'output window, operand 0, single buffered']
    %8 = vsyncpa [#allocation6], 0
    %9 = vsyncpa [#allocation9], 0
    %10 = vsyncpa [#allocation7], 0
    // Predicated region
    $region2: #{tpu_custom_call.1} parent=1 // pred_check
      _
    $region3: #{tpu_custom_call.1} parent=1 // pred_check_branch
      %12 = sbr.rel (0) target = $region5
    $region4: #{tpu_custom_call.1} parent=1 // pred_region
      %14 = vsyncadd [#allocation6], 0
      %s15 = sshll.u32 %s0, 4
      %s16 = int_to_ptr.hbm [resolvable:$true] %s15
      %s17 = sshll.u32 [#allocation5], 4
      %s18 = int_to_ptr.vmem [resolvable:$true] %s17
      %23 = dma.hbm_to_vmem [thread:$0]  %s16, 256, %s18, [#allocation6], 128, 128, 8
    $region5: #{tpu_custom_call.1} parent=1 // pred_fallthru
      _
    // Predicated region
    $region6: #{tpu_custom_call.1} parent=1 // pred_check
      _
    $region7: #{tpu_custom_call.1} parent=1 // pred_check_branch
      %25 = sbr.rel (0) target = $region9
    $region8: #{tpu_custom_call.1} parent=1 // pred_region
      %27 = vsyncadd [#allocation9], 0
      %s28 = sshll.u32 %s1, 4
      %s29 = int_to_ptr.hbm [resolvable:$true] %s28
      %s30 = sshll.u32 [#allocation8], 4
      %s31 = int_to_ptr.vmem [resolvable:$true] %s30
      %36 = dma.hbm_to_vmem [thread:$0]  %s29, 256, %s31, [#allocation9], 64, 64, 4
    $region9: #{tpu_custom_call.1} parent=1 // pred_fallthru
      _
    // Predicated region
    $region10: #{tpu_custom_call.1} parent=1 // pred_check
      _
    $region11: #{tpu_custom_call.1} parent=1 // pred_check_branch
      %38 = sbr.rel (0) target = $region13
    $region12: #{tpu_custom_call.1} parent=1 // pred_region
      _
    $region13: #{tpu_custom_call.1} parent=1 // pred_fallthru
      _
    // Predicated region
    $region14: #{tpu_custom_call.1} parent=1 // pred_check
      _
    $region15: #{tpu_custom_call.1} parent=1 // pred_check_branch
      %40 = sbr.rel (0) target = $region17
    $region16: #{tpu_custom_call.1} parent=1 // pred_region
      %42 = dma.done [#allocation6], 256
    $region17: #{tpu_custom_call.1} parent=1 // pred_fallthru
      _
    // Predicated region
    $region18: #{tpu_custom_call.1} parent=1 // pred_check
      _
    $region19: #{tpu_custom_call.1} parent=1 // pred_check_branch
      %44 = sbr.rel (0) target = $region21
    $region20: #{tpu_custom_call.1} parent=1 // pred_region
      %46 = dma.done [#allocation9], 256
    $region21: #{tpu_custom_call.1} parent=1 // pred_fallthru
      _
    %p48 = scmp.eq.s32.totalorder 0, 0
    // Predicated region
    $region22: #{tpu_custom_call.1} parent=1 // pred_check
      %p49 = pneg %p48
    $region23: #{tpu_custom_call.1} parent=1 // pred_check_branch
      %51 = sbr.rel (%p49) target = $region25
    $region24: #{tpu_custom_call.1} parent=1 // pred_region
      %vm52 = vcmask 254976
      %53 = vst.msk [vmem:[#allocation2] sm:$0x3] %vm52, -inf
      %54 = vst.msk [vmem:[#allocation3] sm:$0x3] %vm52, 0.0
      %55 = vst.msk [vmem:[#allocation4] sm:$0x3] %vm52, 0.0
    $region25: #{tpu_custom_call.1} parent=1 // pred_fallthru
      _
    %v56 = vld [vmem:[#allocation2] sm:$0x3]
    %v57 = vld [vmem:[#allocation3] sm:$0x3]
    %v58 = vld [vmem:[#allocation4] sm:$0x3]
    %v59 = vld [vmem:[#allocation5] sm:$0xff]
    %v60 = vld [vmem:[#allocation5 + $0x8] sm:$0xff]
    %vm61 = vcmask 261120
    %v62 = vsel %vm61, %v59, -inf
    %v63 = vrot.slane %v62, 4
    %v64 = vmax.f32 %v62, %v63
    %v65 = vrot.slane %v64, 2
    %v66 = vmax.f32 %v64, %v65
    %v67 = vrot.slane %v66, 1
    %v68 = vmax.f32 %v66, %v67
    %v69 = vsel %vm61, %v60, -inf
    %v70 = vrot.slane %v69, 4
    %v71 = vmax.f32 %v69, %v70
    %v72 = vrot.slane %v71, 2
    %v73 = vmax.f32 %v71, %v72
    %v74 = vrot.slane %v73, 1
    %v75 = vmax.f32 %v73, %v74
    %vm78 = vcmask 1041409
    %v79 = vsel %vm78, %v75, %v68
    %v81 = vmax.f32 %v56, %v79
    %v82 = vsub.f32 %v56, %v81
    %v83 = vmul.f32 %v82, 1.442695
    %v84 = vpow.pop %v83
    %v86 = vrot.slane %v81, 1
    %v87 = vperm.slane %v81, 0
    %v88 = vperm.slane %v86, 0
    %v91 = vsub.f32 %v59, %v87
    %v92 = vsub.f32 %v60, %v88
    %v93 = vmul.f32 %v91, 1.442695
    %v94 = vpow.pop %v93
    %v95 = vmul.f32 %v92, 1.442695
    %v96 = vpow.pop %v95
    %v97 = vmul.f32 %v57, %v84
    %v98 = vsel %vm61, %v94, 0.0
    %v99 = vrot.slane %v98, 4
    %v100 = vadd.f32 %v98, %v99
    %v101 = vrot.slane %v100, 2
    %v102 = vadd.f32 %v100, %v101
    %v103 = vrot.slane %v102, 1
    %v104 = vadd.f32 %v102, %v103
    %v105 = vsel %vm61, %v96, 0.0
    %v106 = vrot.slane %v105, 4
    %v107 = vadd.f32 %v105, %v106
    %v108 = vrot.slane %v107, 2
    %v109 = vadd.f32 %v107, %v108
    %v110 = vrot.slane %v109, 1
    %v111 = vadd.f32 %v109, %v110
    %v114 = vsel %vm78, %v111, %v104
    %v116 = vadd.f32 %v97, %v114
    %v117 = vmul.f32 %v58, %v84
    %v118 = vmul.f32 %v59, %v94
    %v119 = vmul.f32 %v60, %v96
    %v120 = vsel %vm61, %v118, 0.0
    %v121 = vrot.slane %v120, 4
    %v122 = vadd.f32 %v120, %v121
    %v123 = vrot.slane %v122, 2
    %v124 = vadd.f32 %v122, %v123
    %v125 = vrot.slane %v124, 1
    %v126 = vadd.f32 %v124, %v125
    %v127 = vsel %vm61, %v119, 0.0
    %v128 = vrot.slane %v127, 4
    %v129 = vadd.f32 %v127, %v128
    %v130 = vrot.slane %v129, 2
    %v131 = vadd.f32 %v129, %v130
    %v132 = vrot.slane %v131, 1
    %v133 = vadd.f32 %v131, %v132
    %v136 = vsel %vm78, %v133, %v126
    %v138 = vadd.f32 %v117, %v136
    %vm139 = vcmask 254976
    %140 = vst.msk [vmem:[#allocation2] sm:$0x3] %vm139, %v81
    %141 = vst.msk [vmem:[#allocation3] sm:$0x3] %vm139, %v116
    %142 = vst.msk [vmem:[#allocation4] sm:$0x3] %vm139, %v138
    // Predicated region
    $region26: #{tpu_custom_call.1} parent=1 // pred_check
      %p143 = pneg %p48
    $region27: #{tpu_custom_call.1} parent=1 // pred_check_branch
      %145 = sbr.rel (%p143) target = $region29
    $region28: #{tpu_custom_call.1} parent=1 // pred_region
      %v146 = vrcp.pop %v116
      %v147 = vmul.f32 %v138, %v146
      %v148 = vpack.c.bf16 %v147, %v147
      %v149 = vld [vmem:[#allocation8] sm:$0xf]
      %v150 = vld [vmem:[#allocation8 + $0x4] sm:$0xf]
      %v151 = vld [vmem:[#allocation8 + $0x8] sm:$0xf]
      %v152 = vld [vmem:[#allocation8 + $0xc] sm:$0xf]
      %v153 = vld [vmem:[%s2] sm:$0x1]
      %v155 = vperm.slane %v153, 0
      %v161 = vunpack.c.l.b16 %v149
      %v162 = vunpack.c.l.b16 %v150
      %v163 = vunpack.c.l.b16 %v151
      %v164 = vunpack.c.l.b16 %v152
      %v165 = vpack.c.b16 %v162, %v161
      %v166 = vpack.c.b16 %v164, %v163
      %v170 = vsel %vm61, %v148, 0
      %172 = vmatpush.bf16.msra.mxu0 0
      %173 = vmatpush.bf16.msra.mxu0 0
      %174 = vmatpush.bf16.msra.mxu0 0
      %175 = vmatpush.bf16.msra.mxu0 0
      %176 = vmatpush.bf16.msra.mxu0 0
      %177 = vmatpush.bf16.msra.mxu0 0
      %178 = vmatpush.bf16.msra.mxu0 %v166
      %179 = vmatpush.bf16.msra.mxu0 %v165
      %180 = vmatmul.bf16.gmra.mxu0 %v170
      %v181 = vpop.f32.mrf.mxu0
      %v182 = vadd.f32 %v155, %v181
      %v183 = vpop.f32.mrf.mxu0
      %184 = vdwg.mxu0
      %v185 = vtanh.pop %v182
      %186 = vst.msk [vmem:[#allocation10] sm:$0x3] %vm139, %v185
    $region29: #{tpu_custom_call.1} parent=1 // pred_fallthru
      _
    // Predicated region
    $region30: #{tpu_custom_call.1} parent=1 // pred_check
      _
    $region31: #{tpu_custom_call.1} parent=1 // pred_check_branch
      %188 = sbr.rel (0) target = $region33
    $region32: #{tpu_custom_call.1} parent=1 // pred_region
      %190 = vsyncadd [#allocation7], 0
      %s192 = sshll.u32 [#allocation10], 4
      %s193 = int_to_ptr.vmem [resolvable:$true] %s192
      %s194 = sshll.u32 %s3, 4
      %s195 = int_to_ptr.hbm [resolvable:$true] %s194
      %197 = dma.vmem_to_hbm [thread:$0]  %s193, 32, %s195, [#allocation7]
    $region33: #{tpu_custom_call.1} parent=1 // pred_fallthru
      _
    // Predicated region
    $region34: #{tpu_custom_call.1} parent=1 // pred_check
      _
    $region35: #{tpu_custom_call.1} parent=1 // pred_check_branch
      %199 = sbr.rel (0) target = $region37
    $region36: #{tpu_custom_call.1} parent=1 // pred_region
      %201 = dma.done [#allocation7], 32
    $region37: #{tpu_custom_call.1} parent=1 // pred_fallthru
      _
    %202 = vsyncpa [#allocation6], 1
    %203 = vsyncpa [#allocation9], 1
    %204 = vsyncpa [#allocation7], 1

</llo_original>
